<compile_context>
chip_gen: v5e
topology: v5e:2x2
jax: 0.10.0
libtpu: 0.0.40
codegen_flags: <defaults>
</compile_context>

<pallas_src>
import jax
import jax.numpy as jnp
from jax import lax
from jax.experimental import pallas as pl
from jax.experimental.pallas import tpu as pltpu


def _kldivproto_kernel(labels_ref, p_ref, q_ref, out_ref):
    # labels_ref: (B,) int32 in SMEM
    # p_ref:      (C, D)     in VMEM
    # q_ref:      (B, D)     in VMEM
    # out_ref:    (1,)  f32  in SMEM
    B, D = q_ref.shape
    C = p_ref.shape[0]

    # Static unroll: B independent (1, D) sublane gathers driven by SMEM
    # scalars.  No serial dependency between them.
    rows = []
    for b in range(B):
        y = jnp.clip(labels_ref[b], 0, C - 1)          # guard against OOB labels
        rows.append(p_ref[pl.ds(y, 1), :])             # (1, D) gathered row
    pg = jnp.concatenate(rows, axis=0).astype(jnp.float32) + 1e-4   # (B, D)

    qv = q_ref[...].astype(jnp.float32)                              # (B, D)

    # loss contribution per element: p*log(p) - q*p, computed in ONE
    # vectorized VPU/EUP pass over the full (B, D) block.
    contrib = pg * (jnp.log(pg) - qv)                                # (B, D)

    out_ref[0] = jnp.sum(contrib) * (1.0 / B)


def kldivproto_pallas(p, labels, q):
    """p: (C, D), labels: (B,) int, q: (B, D) -> scalar f32 loss."""
    out = pl.pallas_call(
        _kldivproto_kernel,
        out_shape=jax.ShapeDtypeStruct((1,), jnp.float32),
        in_specs=[
            pl.BlockSpec(memory_space=pltpu.MemorySpace.SMEM),   # labels
            pl.BlockSpec(memory_space=pltpu.MemorySpace.VMEM),   # p
            pl.BlockSpec(memory_space=pltpu.MemorySpace.VMEM),   # q
        ],
        out_specs=pl.BlockSpec(memory_space=pltpu.MemorySpace.SMEM),
    )(labels.astype(jnp.int32), p, q)
    return out[0]


def kldivproto_ref(p, labels, q, num_classes):
    """Pure-JAX reference mirroring the PyTorch forward."""
    B = q.shape[0]
    p = p.astype(jnp.float32) + 1e-4
    cont2 = jnp.matmul(q.astype(jnp.float32), p.T,
                       precision=lax.Precision.HIGHEST)          # (B, C)
    cont1 = jnp.sum(p * jnp.log(p), axis=1)                      # (C,)
    klsum = cont1[None, :] - cont2                               # (B, C)
    classes = jnp.arange(num_classes, dtype=jnp.int32)
    mask = labels[:, None] == classes[None, :]
    return jnp.sum(jnp.where(mask, klsum, 0.0)) / B


if __name__ == "__main__":
    num_classes = 10   # module default
    B, D = 8, 32       # small batch / hidden

    key = jax.random.PRNGKey(0)
    kp, kq, kl = jax.random.split(key, 3)

    # p must be positive (log is taken); use uniform in (0.05, 1.0).
    p = jax.random.uniform(kp, (num_classes, D), dtype=jnp.float32,
                           minval=0.05, maxval=1.0)
    q = jax.random.normal(kq, (B, D), dtype=jnp.float32)
    labels = jax.random.randint(kl, (B,), 0, num_classes, dtype=jnp.int32)

    loss = kldivproto_pallas(p, labels, q)
    loss = jax.block_until_ready(loss)

    ref = kldivproto_ref(p, labels, q, num_classes)
    assert jnp.allclose(loss, ref, rtol=1e-5, atol=1e-5), (loss, ref)

    print("KERNEL_OK")
</pallas_src>

<mosaic_0001>
module attributes {stable_mosaic.version = 11 : i64} {
  func.func @_kldivproto_kernel(%arg0: memref<8xi32, #tpu.memory_space<smem>>, %arg1: memref<10x32xf32, #tpu.memory_space<vmem>>, %arg2: memref<8x32xf32, #tpu.memory_space<vmem>>, %arg3: memref<1xf32, #tpu.memory_space<smem>>) attributes {dimension_semantics = [], scalar_prefetch = 0 : i64, scratch_operands = 0 : i64, tpu.core_type = #tpu.core_type<tc>} {
    %c0 = arith.constant 0 : index
    %0 = memref.load %arg0[%c0] : memref<8xi32, #tpu.memory_space<smem>>
    %c0_i32 = arith.constant 0 : i32
    %c9_i32 = arith.constant 9 : i32
    %1 = arith.maxsi %c0_i32, %0 : i32
    %2 = arith.minsi %c9_i32, %1 : i32
    %3 = arith.index_cast %2 : i32 to index
    %c0_0 = arith.constant 0 : index
    %4 = vector.load %arg1[%3, %c0_0] : memref<10x32xf32, #tpu.memory_space<vmem>>, vector<1x32xf32>
    %c1 = arith.constant 1 : index
    %5 = memref.load %arg0[%c1] : memref<8xi32, #tpu.memory_space<smem>>
    %c0_i32_1 = arith.constant 0 : i32
    %c9_i32_2 = arith.constant 9 : i32
    %6 = arith.maxsi %c0_i32_1, %5 : i32
    %7 = arith.minsi %c9_i32_2, %6 : i32
    %8 = arith.index_cast %7 : i32 to index
    %c0_3 = arith.constant 0 : index
    %9 = vector.load %arg1[%8, %c0_3] : memref<10x32xf32, #tpu.memory_space<vmem>>, vector<1x32xf32>
    %c2 = arith.constant 2 : index
    %10 = memref.load %arg0[%c2] : memref<8xi32, #tpu.memory_space<smem>>
    %c0_i32_4 = arith.constant 0 : i32
    %c9_i32_5 = arith.constant 9 : i32
    %11 = arith.maxsi %c0_i32_4, %10 : i32
    %12 = arith.minsi %c9_i32_5, %11 : i32
    %13 = arith.index_cast %12 : i32 to index
    %c0_6 = arith.constant 0 : index
    %14 = vector.load %arg1[%13, %c0_6] : memref<10x32xf32, #tpu.memory_space<vmem>>, vector<1x32xf32>
    %c3 = arith.constant 3 : index
    %15 = memref.load %arg0[%c3] : memref<8xi32, #tpu.memory_space<smem>>
    %c0_i32_7 = arith.constant 0 : i32
    %c9_i32_8 = arith.constant 9 : i32
    %16 = arith.maxsi %c0_i32_7, %15 : i32
    %17 = arith.minsi %c9_i32_8, %16 : i32
    %18 = arith.index_cast %17 : i32 to index
    %c0_9 = arith.constant 0 : index
    %19 = vector.load %arg1[%18, %c0_9] : memref<10x32xf32, #tpu.memory_space<vmem>>, vector<1x32xf32>
    %c4 = arith.constant 4 : index
    %20 = memref.load %arg0[%c4] : memref<8xi32, #tpu.memory_space<smem>>
    %c0_i32_10 = arith.constant 0 : i32
    %c9_i32_11 = arith.constant 9 : i32
    %21 = arith.maxsi %c0_i32_10, %20 : i32
    %22 = arith.minsi %c9_i32_11, %21 : i32
    %23 = arith.index_cast %22 : i32 to index
    %c0_12 = arith.constant 0 : index
    %24 = vector.load %arg1[%23, %c0_12] : memref<10x32xf32, #tpu.memory_space<vmem>>, vector<1x32xf32>
    %c5 = arith.constant 5 : index
    %25 = memref.load %arg0[%c5] : memref<8xi32, #tpu.memory_space<smem>>
    %c0_i32_13 = arith.constant 0 : i32
    %c9_i32_14 = arith.constant 9 : i32
    %26 = arith.maxsi %c0_i32_13, %25 : i32
    %27 = arith.minsi %c9_i32_14, %26 : i32
    %28 = arith.index_cast %27 : i32 to index
    %c0_15 = arith.constant 0 : index
    %29 = vector.load %arg1[%28, %c0_15] : memref<10x32xf32, #tpu.memory_space<vmem>>, vector<1x32xf32>
    %c6 = arith.constant 6 : index
    %30 = memref.load %arg0[%c6] : memref<8xi32, #tpu.memory_space<smem>>
    %c0_i32_16 = arith.constant 0 : i32
    %c9_i32_17 = arith.constant 9 : i32
    %31 = arith.maxsi %c0_i32_16, %30 : i32
    %32 = arith.minsi %c9_i32_17, %31 : i32
    %33 = arith.index_cast %32 : i32 to index
    %c0_18 = arith.constant 0 : index
    %34 = vector.load %arg1[%33, %c0_18] : memref<10x32xf32, #tpu.memory_space<vmem>>, vector<1x32xf32>
    %c7 = arith.constant 7 : index
    %35 = memref.load %arg0[%c7] : memref<8xi32, #tpu.memory_space<smem>>
    %c0_i32_19 = arith.constant 0 : i32
    %c9_i32_20 = arith.constant 9 : i32
    %36 = arith.maxsi %c0_i32_19, %35 : i32
    %37 = arith.minsi %c9_i32_20, %36 : i32
    %38 = arith.index_cast %37 : i32 to index
    %c0_21 = arith.constant 0 : index
    %39 = vector.load %arg1[%38, %c0_21] : memref<10x32xf32, #tpu.memory_space<vmem>>, vector<1x32xf32>
    %40 = tpu.concatenate %4, %9, %14, %19, %24, %29, %34, %39 in 0 : vector<1x32xf32>, vector<1x32xf32>, vector<1x32xf32>, vector<1x32xf32>, vector<1x32xf32>, vector<1x32xf32>, vector<1x32xf32>, vector<1x32xf32> -> vector<8x32xf32>
    %cst = arith.constant 9.99999974E-5 : f32
    %41 = vector.broadcast %cst : f32 to vector<8x32xf32>
    %42 = arith.addf %40, %41 : vector<8x32xf32>
    %c0_22 = arith.constant 0 : index
    %c0_23 = arith.constant 0 : index
    %43 = vector.load %arg2[%c0_22, %c0_23] : memref<8x32xf32, #tpu.memory_space<vmem>>, vector<8x32xf32>
    %44 = math.log %42 : vector<8x32xf32>
    %45 = arith.subf %44, %43 : vector<8x32xf32>
    %46 = arith.mulf %42, %45 : vector<8x32xf32>
    %47 = vector.shape_cast %46 : vector<8x32xf32> to vector<1x8x32xf32>
    %cst_24 = arith.constant dense<0.000000e+00> : vector<1xf32>
    %48 = vector.multi_reduction <add>, %47, %cst_24 [1, 2] : vector<1x8x32xf32> to vector<1xf32>
    %49 = vector.shape_cast %48 : vector<1xf32> to vector<1x1x1xf32>
    %50 = vector.extract %49[0, 0, 0] : f32 from vector<1x1x1xf32>
    %cst_25 = arith.constant 1.250000e-01 : f32
    %51 = arith.mulf %50, %cst_25 : f32
    %c0_26 = arith.constant 0 : index
    %52 = memref.load %arg3[%c0_26] : memref<1xf32, #tpu.memory_space<smem>>
    memref.store %51, %arg3[%c0_26] : memref<1xf32, #tpu.memory_space<smem>>
    return
  }
}

</mosaic_0001>

<llo_original>
// kernel: tpu_custom_call.1
$region0: #{tpu_custom_call.1}
  #allocation0 [shape = 'u32[]', space=smem, size = 0x4, offset = 0x4, fixed_abs, tag = 'smem constant byte address 0x4 - core index']
  #allocation1 [shape = 'u32[72,128]{1,0:T(1,128)}', space=vmem, size = 0x9000, scoped, tag = 'internal scratch']
  %s0 = inlined_call_operand.hbm [shape: s32[8], index: 0, kind: input, shape index: {}]
  %s1 = inlined_call_operand.hbm [shape: f32[10,32], index: 1, kind: input, shape index: {}]
  %s2 = inlined_call_operand.hbm [shape: f32[8,32], index: 2, kind: input, shape index: {}]
  %s3 = inlined_call_operand.hbm [shape: f32[1], index: 3, kind: output, shape index: {}]
  %s4 = sld [smem:[#allocation0]]
  $region34: #{tpu_custom_call.1} parent=0
    _
  %s6 = ssub.s32 1, %s4
  %s7 = scalar_select 0, %s6, %s4
  $region1: #{tpu_custom_call.1} parent=0
    #allocation2 [shape = 'u8[512]{0}', space=smem, size = 0x200, scoped, tag = 'input window, operand 0, single buffered']
    #allocation3 [shape = 's32[1]{0}', space=sflag, size = 0x4, scoped, tag = 'scoped memory for tpu_custom_call.1']
    #allocation4 [shape = 's32[1]{0}', space=sflag, size = 0x4, scoped, tag = 'scoped memory for tpu_custom_call.1']
    #allocation5 [shape = 's32[1]{0}', space=sflag, size = 0x4, scoped, tag = 'scoped memory for tpu_custom_call.1']
    #allocation6 [shape = 'u8[8192]{0}', space=vmem, size = 0x2000, scoped, tag = 'input window, operand 1, single buffered']
    #allocation7 [shape = 'u8[4096]{0}', space=vmem, size = 0x1000, scoped, tag = 'input window, operand 2, single buffered']
    #allocation8 [shape = 's32[1]{0}', space=sflag, size = 0x4, scoped, tag = 'scoped memory for tpu_custom_call.1']
    #allocation9 [shape = 'u8[512]{0}', space=smem, size = 0x200, scoped, tag = 'output window, operand 0, single buffered']
    %8 = vsyncpa [#allocation4], 0
    %9 = vsyncpa [#allocation3], 0
    %10 = vsyncpa [#allocation8], 0
    %11 = vsyncpa [#allocation5], 0
    // Predicated region
    $region2: #{tpu_custom_call.1} parent=1 // pred_check
      _
    $region3: #{tpu_custom_call.1} parent=1 // pred_check_branch
      %13 = sbr.rel (0) target = $region5
    $region4: #{tpu_custom_call.1} parent=1 // pred_region
      %15 = vsyncadd [#allocation4], 0
      %s17 = sshll.u32 %s0, 4
      %s18 = int_to_ptr.hbm [resolvable:$true] %s17
      %20 = dma.hbm_to_smem %s18, 16, [#allocation2], [#allocation4]
    $region5: #{tpu_custom_call.1} parent=1 // pred_fallthru
      _
    // Predicated region
    $region6: #{tpu_custom_call.1} parent=1 // pred_check
      _
    $region7: #{tpu_custom_call.1} parent=1 // pred_check_branch
      %22 = sbr.rel (0) target = $region9
    $region8: #{tpu_custom_call.1} parent=1 // pred_region
      %24 = vsyncadd [#allocation3], 0
      %s25 = sshll.u32 %s1, 4
      %s26 = int_to_ptr.hbm [resolvable:$true] %s25
      %s27 = sshll.u32 [#allocation6], 4
      %s28 = int_to_ptr.vmem [resolvable:$true] %s27
      %33 = dma.hbm_to_vmem [thread:$0]  %s26, 256, %s28, [#allocation3], 128, 128, 8
    $region9: #{tpu_custom_call.1} parent=1 // pred_fallthru
      _
    // Predicated region
    $region10: #{tpu_custom_call.1} parent=1 // pred_check
      _
    $region11: #{tpu_custom_call.1} parent=1 // pred_check_branch
      %35 = sbr.rel (0) target = $region13
    $region12: #{tpu_custom_call.1} parent=1 // pred_region
      %37 = vsyncadd [#allocation8], 0
      %s39 = sshll.u32 %s2, 4
      %s40 = int_to_ptr.hbm [resolvable:$true] %s39
      %s41 = sshll.u32 [#allocation7], 4
      %s42 = int_to_ptr.vmem [resolvable:$true] %s41
      %44 = dma.hbm_to_vmem [thread:$0]  %s40, 128, %s42, [#allocation8]
    $region13: #{tpu_custom_call.1} parent=1 // pred_fallthru
      _
    // Predicated region
    $region14: #{tpu_custom_call.1} parent=1 // pred_check
      _
    $region15: #{tpu_custom_call.1} parent=1 // pred_check_branch
      %46 = sbr.rel (0) target = $region17
    $region16: #{tpu_custom_call.1} parent=1 // pred_region
      %48 = dma.done [#allocation4], 16
    $region17: #{tpu_custom_call.1} parent=1 // pred_fallthru
      _
    // Predicated region
    $region18: #{tpu_custom_call.1} parent=1 // pred_check
      _
    $region19: #{tpu_custom_call.1} parent=1 // pred_check_branch
      %50 = sbr.rel (0) target = $region21
    $region20: #{tpu_custom_call.1} parent=1 // pred_region
      %52 = dma.done [#allocation3], 256
    $region21: #{tpu_custom_call.1} parent=1 // pred_fallthru
      _
    // Predicated region
    $region22: #{tpu_custom_call.1} parent=1 // pred_check
      _
    $region23: #{tpu_custom_call.1} parent=1 // pred_check_branch
      %54 = sbr.rel (0) target = $region25
    $region24: #{tpu_custom_call.1} parent=1 // pred_region
      %56 = dma.done [#allocation8], 128
    $region25: #{tpu_custom_call.1} parent=1 // pred_fallthru
      _
    %57 = sfence
    %s58 = sld [smem:[#allocation2]]
    %p59 = scmp.gt.s32.totalorder %s58, 0
    %s60 = scalar_select %p59, %s58, 0
    %p61 = scmp.lt.s32.totalorder %s60, 9
    %s62 = scalar_select %p61, %s60, 9
    %s63 = scalar_lea.vmem [#allocation6], %s62
    %v64 = vld [vmem:[%s63] sm:$0x1]
    %s65 = sld [smem:[#allocation2 + $0x1]]
    %p66 = scmp.gt.s32.totalorder %s65, 0
    %s67 = scalar_select %p66, %s65, 0
    %p68 = scmp.lt.s32.totalorder %s67, 9
    %s69 = scalar_select %p68, %s67, 9
    %s70 = scalar_lea.vmem [#allocation6], %s69
    %v71 = vld [vmem:[%s70] sm:$0x1]
    %s72 = sld [smem:[#allocation2 + $0x2]]
    %p73 = scmp.gt.s32.totalorder %s72, 0
    %s74 = scalar_select %p73, %s72, 0
    %p75 = scmp.lt.s32.totalorder %s74, 9
    %s76 = scalar_select %p75, %s74, 9
    %s77 = scalar_lea.vmem [#allocation6], %s76
    %v78 = vld [vmem:[%s77] sm:$0x1]
    %s79 = sld [smem:[#allocation2 + $0x3]]
    %p80 = scmp.gt.s32.totalorder %s79, 0
    %s81 = scalar_select %p80, %s79, 0
    %p82 = scmp.lt.s32.totalorder %s81, 9
    %s83 = scalar_select %p82, %s81, 9
    %s84 = scalar_lea.vmem [#allocation6], %s83
    %v85 = vld [vmem:[%s84] sm:$0x1]
    %s86 = sld [smem:[#allocation2 + $0x4]]
    %p87 = scmp.gt.s32.totalorder %s86, 0
    %s88 = scalar_select %p87, %s86, 0
    %p89 = scmp.lt.s32.totalorder %s88, 9
    %s90 = scalar_select %p89, %s88, 9
    %s91 = scalar_lea.vmem [#allocation6], %s90
    %v92 = vld [vmem:[%s91] sm:$0x1]
    %s93 = sld [smem:[#allocation2 + $0x5]]
    %p94 = scmp.gt.s32.totalorder %s93, 0
    %s95 = scalar_select %p94, %s93, 0
    %p96 = scmp.lt.s32.totalorder %s95, 9
    %s97 = scalar_select %p96, %s95, 9
    %s98 = scalar_lea.vmem [#allocation6], %s97
    %v99 = vld [vmem:[%s98] sm:$0x1]
    %s100 = sld [smem:[#allocation2 + $0x6]]
    %p101 = scmp.gt.s32.totalorder %s100, 0
    %s102 = scalar_select %p101, %s100, 0
    %p103 = scmp.lt.s32.totalorder %s102, 9
    %s104 = scalar_select %p103, %s102, 9
    %s105 = scalar_lea.vmem [#allocation6], %s104
    %v106 = vld [vmem:[%s105] sm:$0x1]
    %s107 = sld [smem:[#allocation2 + $0x7]]
    %p108 = scmp.gt.s32.totalorder %s107, 0
    %s109 = scalar_select %p108, %s107, 0
    %p110 = scmp.lt.s32.totalorder %s109, 9
    %s111 = scalar_select %p110, %s109, 9
    %s112 = scalar_lea.vmem [#allocation6], %s111
    %v113 = vld [vmem:[%s112] sm:$0x1]
    %v115 = vrot.slane %v71, 7
    %v118 = vrot.slane %v78, 6
    %v121 = vrot.slane %v85, 5
    %v124 = vrot.slane %v92, 4
    %v127 = vrot.slane %v99, 3
    %v130 = vrot.slane %v106, 2
    %v133 = vrot.slane %v113, 1
    %vm135 = vcmask 1040384
    %v136 = vsel %vm135, %v64, %v115
    %vm137 = vcmask 1041408
    %v138 = vsel %vm137, %v136, %v118
    %vm139 = vcmask 1042432
    %v140 = vsel %vm139, %v138, %v121
    %vm141 = vcmask 1043456
    %v142 = vsel %vm141, %v140, %v124
    %vm143 = vcmask 1044480
    %v144 = vsel %vm143, %v142, %v127
    %vm145 = vcmask 1045504
    %v146 = vsel %vm145, %v144, %v130
    %vm147 = vcmask 1046528
    %v148 = vsel %vm147, %v146, %v133
    %v149 = vadd.f32 %v148, 0.0001
    %v150 = vld [vmem:[#allocation7] sm:$0xff]
    %v151 = vlog2.pop %v149
    %v152 = vmul.f32 %v151, 0.6931472
    %v153 = vsub.f32 %v152, %v150
    %v154 = vmul.f32 %v149, %v153
    %vm155 = vcmask 261120
    %v156 = vsel %vm155, %v154, 0.0
    %157 = vadd.xlane.f32.xlu0 %v156
    %v158 = vpop.xlane.xlu0 %157
    %v159 = vrot.slane %v158, 4
    %v160 = vadd.f32 %v158, %v159
    %v161 = vrot.slane %v160, 2
    %v162 = vadd.f32 %v160, %v161
    %v163 = vrot.slane %v162, 1
    %v164 = vadd.f32 %v162, %v163
    %s165 = vtos %v164
    %s166 = smul.f32 %s165, 0.125
    %s167 = scalar_lea.smem [#allocation9], 0
    %168 = sst [smem:[%s167]] %s166
    // Predicated region
    $region26: #{tpu_custom_call.1} parent=1 // pred_check
      _
    $region27: #{tpu_custom_call.1} parent=1 // pred_check_branch
      %170 = sbr.rel (0) target = $region29
    $region28: #{tpu_custom_call.1} parent=1 // pred_region
      %172 = vsyncadd [#allocation5], 0
      %s174 = sshll.u32 %s3, 4
      %s175 = int_to_ptr.hbm [resolvable:$true] %s174
      %177 = dma.smem_to_hbm [#allocation9], 16, %s175, [#allocation5]
    $region29: #{tpu_custom_call.1} parent=1 // pred_fallthru
      _
    // Predicated region
    $region30: #{tpu_custom_call.1} parent=1 // pred_check
      _
    $region31: #{tpu_custom_call.1} parent=1 // pred_check_branch
      %179 = sbr.rel (0) target = $region33
    $region32: #{tpu_custom_call.1} parent=1 // pred_region
      %181 = dma.done [#allocation5], 16
    $region33: #{tpu_custom_call.1} parent=1 // pred_fallthru
      _
    %182 = sfence
    %183 = vsyncpa [#allocation3], 1
    %184 = vsyncpa [#allocation8], 1
    %185 = vsyncpa [#allocation4], 1
    %186 = vsyncpa [#allocation5], 1

</llo_original>
